<compile_context>
chip_gen: v6e
topology: v6e:2x2x1
jax: 0.10.0
libtpu: 0.0.40
codegen_flags: <defaults>
</compile_context>

<pallas_src>
import jax
import jax.numpy as jnp
from jax.experimental import pallas as pl
from jax.experimental.pallas import tpu as pltpu

EPS = 1e-5


def _layernorm_kernel(x_ref, g_ref, b_ref, o_ref):
    # x_ref: (TB, N) block — TB batch rows, N = S*H lane-dense last dim.
    # g_ref/b_ref: (1, N) shared parameter rows (broadcast over TB).
    x = x_ref[...].astype(jnp.float32)
    mean = jnp.mean(x, axis=1, keepdims=True)           # (TB, 1) per-sample mean
    xc = x - mean
    var = jnp.mean(xc * xc, axis=1, keepdims=True)      # biased variance (matches torch .mean())
    inv = jax.lax.rsqrt(var + EPS)                      # EUP rsqrt; avoids broadcast divide on VPU
    y = xc * inv                                        # keepdims scalar broadcasts in the fused mul
    g = g_ref[...].astype(jnp.float32)
    b = b_ref[...].astype(jnp.float32)
    o_ref[...] = (g * y + b).astype(o_ref.dtype)


def layer_normalization(x, gamma, beta):
    """x: (B, S, H); gamma, beta: (S, H). Normalize jointly over last two dims."""
    B, S, H = x.shape
    assert gamma.shape == (S, H) and beta.shape == (S, H)
    N = S * H

    # Lane-dense presentation: the whole (S, H) normalization plane becomes the
    # last dim. The block's last dim equals the full array dim, so the (8,128)
    # constraint is always satisfied (and it's a multiple of 128 for typical H*S).
    x2 = x.reshape(B, N)
    g2 = gamma.reshape(1, N)
    b2 = beta.reshape(1, N)

    # Pick TB (batch rows per grid step): as many as fit a ~24 MiB budget for the
    # double-buffered f32 input + output tiles (2x in + 2x out = 4 copies). This
    # keeps us inside v7x's 32 MiB scoped default while still giving big tiles
    # on v5e/v6e. If TB < B it must be a multiple of 8 (sublane constraint).
    x_tile_budget = 24 * 1024 * 1024
    bytes_per_row = 4 * N                       # one f32 row
    max_tb = max(1, x_tile_budget // (4 * bytes_per_row))
    if max_tb >= B:
        tb = B                                  # whole batch in one step (demo case)
    else:
        tb = max(8, (max_tb // 8) * 8)

    grid = (pl.cdiv(B, tb),)

    out2 = pl.pallas_call(
        _layernorm_kernel,
        out_shape=jax.ShapeDtypeStruct((B, N), x.dtype),
        grid_spec=pltpu.PrefetchScalarGridSpec(
            num_scalar_prefetch=0,
            grid=grid,
            in_specs=[
                pl.BlockSpec((tb, N), lambda i: (i, 0)),   # TB batch rows per step
                pl.BlockSpec((1, N), lambda i: (0, 0)),    # gamma (shared, constant index)
                pl.BlockSpec((1, N), lambda i: (0, 0)),    # beta  (shared, constant index)
            ],
            out_specs=pl.BlockSpec((tb, N), lambda i: (i, 0)),
        ),
        compiler_params=pltpu.CompilerParams(
            dimension_semantics=("parallel",),   # megacore-shardable batch axis (v7x)
            vmem_limit_bytes=64 << 20,           # let tiles grow toward HBM roofline
        ),
    )(x2, g2, b2)

    # TODO(synk): gamma/beta could be single-buffered (pipeline_mode=pl.Buffered(1))
    # to shave VMEM on v7x; skipped here to keep broad compatibility (they're tiny).

    return out2.reshape(B, S, H)


def _reference(x, gamma, beta):
    xf = x.astype(jnp.float32)
    mean = jnp.mean(xf, axis=(-2, -1), keepdims=True)
    var = jnp.mean((xf - mean) ** 2, axis=(-2, -1), keepdims=True)
    std = jnp.sqrt(var + EPS)
    y = (xf - mean) / std
    return (gamma.astype(jnp.float32) * y + beta.astype(jnp.float32)).astype(x.dtype)


if __name__ == "__main__":
    B, S, H = 2, 8, 32  # batch=2, seq=8, hidden=32 -> parameters_shape = (8, 32)

    key = jax.random.PRNGKey(0)
    x = jax.random.normal(key, (B, S, H), dtype=jnp.float32)

    # Deterministic parameter init, matching nn.Parameter(torch.ones/zeros(...))
    gamma = jnp.ones((S, H), dtype=jnp.float32)
    beta = jnp.zeros((S, H), dtype=jnp.float32)

    out = jax.block_until_ready(layer_normalization(x, gamma, beta))

    ref = _reference(x, gamma, beta)
    assert out.shape == (B, S, H)
    assert jnp.allclose(out, ref, atol=1e-5, rtol=1e-5), "mismatch vs reference"

    print("KERNEL_OK")
</pallas_src>

<mosaic_0001>
module attributes {stable_mosaic.version = 11 : i64} {
  func.func @_layernorm_kernel(%arg0: i32, %arg1: memref<2x256xf32, #tpu.memory_space<vmem>>, %arg2: memref<1x256xf32, #tpu.memory_space<vmem>>, %arg3: memref<1x256xf32, #tpu.memory_space<vmem>>, %arg4: memref<2x256xf32, #tpu.memory_space<vmem>>) attributes {dimension_semantics = [#tpu.dimension_semantics<parallel>], iteration_bounds = array<i64: 1>, scalar_prefetch = 0 : i64, scratch_operands = 0 : i64, tpu.core_type = #tpu.core_type<tc>, window_params = [{transform_indices = @transform_0, window_bounds = array<i64: 2, 256>}, {pipeline_mode = #tpu.pipeline_mode<synchronous>, transform_indices = @transform_1, window_bounds = array<i64: 1, 256>}, {pipeline_mode = #tpu.pipeline_mode<synchronous>, transform_indices = @transform_2, window_bounds = array<i64: 1, 256>}, {transform_indices = @transform_3, window_bounds = array<i64: 2, 256>}]} {
    %c0 = arith.constant 0 : index
    %c0_0 = arith.constant 0 : index
    %0 = vector.load %arg1[%c0, %c0_0] : memref<2x256xf32, #tpu.memory_space<vmem>>, vector<2x256xf32>
    %cst = arith.constant dense<0.000000e+00> : vector<2xf32>
    %1 = vector.multi_reduction <add>, %0, %cst [1] : vector<2x256xf32> to vector<2xf32>
    %2 = vector.shape_cast %1 : vector<2xf32> to vector<2x1xf32>
    %cst_1 = arith.constant 2.560000e+02 : f32
    %3 = vector.broadcast %cst_1 : f32 to vector<2x1xf32>
    %4 = arith.divf %2, %3 : vector<2x1xf32>
    %5 = vector.broadcast %4 : vector<2x1xf32> to vector<2x256xf32>
    %6 = arith.subf %0, %5 : vector<2x256xf32>
    %7 = arith.mulf %6, %6 : vector<2x256xf32>
    %cst_2 = arith.constant dense<0.000000e+00> : vector<2xf32>
    %8 = vector.multi_reduction <add>, %7, %cst_2 [1] : vector<2x256xf32> to vector<2xf32>
    %9 = vector.shape_cast %8 : vector<2xf32> to vector<2x1xf32>
    %cst_3 = arith.constant 2.560000e+02 : f32
    %10 = vector.broadcast %cst_3 : f32 to vector<2x1xf32>
    %11 = arith.divf %9, %10 : vector<2x1xf32>
    %cst_4 = arith.constant 9.99999974E-6 : f32
    %12 = vector.broadcast %cst_4 : f32 to vector<2x1xf32>
    %13 = arith.addf %11, %12 : vector<2x1xf32>
    %14 = math.rsqrt %13 : vector<2x1xf32>
    %15 = vector.broadcast %14 : vector<2x1xf32> to vector<2x256xf32>
    %16 = arith.mulf %6, %15 : vector<2x256xf32>
    %c0_5 = arith.constant 0 : index
    %c0_6 = arith.constant 0 : index
    %17 = vector.load %arg2[%c0_5, %c0_6] : memref<1x256xf32, #tpu.memory_space<vmem>>, vector<1x256xf32>
    %c0_7 = arith.constant 0 : index
    %c0_8 = arith.constant 0 : index
    %18 = vector.load %arg3[%c0_7, %c0_8] : memref<1x256xf32, #tpu.memory_space<vmem>>, vector<1x256xf32>
    %19 = vector.broadcast %17 : vector<1x256xf32> to vector<2x256xf32>
    %20 = arith.mulf %19, %16 : vector<2x256xf32>
    %21 = vector.broadcast %18 : vector<1x256xf32> to vector<2x256xf32>
    %22 = arith.addf %20, %21 : vector<2x256xf32>
    %c0_9 = arith.constant 0 : index
    %c0_10 = arith.constant 0 : index
    %23 = vector.load %arg4[%c0_9, %c0_10] : memref<2x256xf32, #tpu.memory_space<vmem>>, vector<2x256xf32>
    tpu.vector_store %arg4[%c0_9, %c0_10], %22 {strides = array<i32>} : memref<2x256xf32, #tpu.memory_space<vmem>>, vector<2x256xf32>,
    return
  }
  func.func @transform_0(%arg0: i32) -> (i32, i32) {
    %c0_i32 = arith.constant 0 : i32
    %c0_i32_0 = arith.constant 0 : i32
    return %arg0, %c0_i32 : i32, i32
  }
  func.func @transform_1(%arg0: i32) -> (i32, i32) {
    %c0_i32 = arith.constant 0 : i32
    %c0_i32_0 = arith.constant 0 : i32
    %c0_i32_1 = arith.constant 0 : i32
    return %c0_i32, %c0_i32_0 : i32, i32
  }
  func.func @transform_2(%arg0: i32) -> (i32, i32) {
    %c0_i32 = arith.constant 0 : i32
    %c0_i32_0 = arith.constant 0 : i32
    %c0_i32_1 = arith.constant 0 : i32
    return %c0_i32, %c0_i32_0 : i32, i32
  }
  func.func @transform_3(%arg0: i32) -> (i32, i32) {
    %c0_i32 = arith.constant 0 : i32
    %c0_i32_0 = arith.constant 0 : i32
    return %arg0, %c0_i32 : i32, i32
  }
}

</mosaic_0001>

<llo_original>
// kernel: tpu_custom_call.1
$region0: #{tpu_custom_call.1}
  #allocation0 [shape = 'u32[]', space=smem, size = 0x4, offset = 0x4, fixed_abs, tag = 'smem constant byte address 0x4 - core index']
  #allocation1 [shape = 'u32[144,128]{1,0:T(1,128)}', space=vmem, size = 0x12000, scoped, tag = 'internal scratch']
  %s0 = inlined_call_operand.hbm [shape: f32[2,256], index: 0, kind: input, shape index: {}]
  %s1 = inlined_call_operand.hbm [shape: f32[1,256], index: 1, kind: input, shape index: {}]
  %s2 = inlined_call_operand.vmem [shape: f32[1,256], index: 2, kind: input, shape index: {}]
  %s3 = inlined_call_operand.hbm [shape: f32[2,256], index: 3, kind: output, shape index: {}]
  %s4 = sld [smem:[#allocation0]]
  $region30: #{tpu_custom_call.1} parent=0
    _
  %s6 = ssub.s32 1, %s4
  %s7 = scalar_select 0, %s6, %s4
  $region1: #{tpu_custom_call.1} parent=0
    #allocation2 [shape = 'u8[2048]{0}', space=vmem, size = 0x800, scoped, tag = 'input window, operand 0, single buffered']
    #allocation3 [shape = 's32[1]{0}', space=sflag, size = 0x4, scoped, tag = 'scoped memory for tpu_custom_call.1']
    #allocation4 [shape = 's32[1]{0}', space=sflag, size = 0x4, scoped, tag = 'scoped memory for tpu_custom_call.1']
    #allocation5 [shape = 'u8[1024]{0}', space=vmem, size = 0x400, scoped, tag = 'input window, operand 1, single buffered']
    #allocation6 [shape = 's32[1]{0}', space=sflag, size = 0x4, scoped, tag = 'scoped memory for tpu_custom_call.1']
    #allocation7 [shape = 'u8[2048]{0}', space=vmem, size = 0x800, scoped, tag = 'output window, operand 0, single buffered']
    %8 = vsyncpa [#allocation3], 0
    %9 = vsyncpa [#allocation6], 0
    %10 = vsyncpa [#allocation4], 0
    // Predicated region
    $region2: #{tpu_custom_call.1} parent=1 // pred_check
      _
    $region3: #{tpu_custom_call.1} parent=1 // pred_check_branch
      %12 = sbr.rel (0) target = $region5
    $region4: #{tpu_custom_call.1} parent=1 // pred_region
      %s14 = ssub.s32 64, 64
      %15 = vsyncadd [#allocation3], %s14
      %s17 = sshll.u32 [#allocation2], 4
      %s18 = int_to_ptr.vmem [resolvable:$true] %s17
      %20 = dma.hbm_to_vmem [thread:$0]  %s0, 64, %s18, [#allocation3]
    $region5: #{tpu_custom_call.1} parent=1 // pred_fallthru
      _
    // Predicated region
    $region6: #{tpu_custom_call.1} parent=1 // pred_check
      _
    $region7: #{tpu_custom_call.1} parent=1 // pred_check_branch
      %22 = sbr.rel (0) target = $region9
    $region8: #{tpu_custom_call.1} parent=1 // pred_region
      %s24 = ssub.s32 32, 32
      %25 = vsyncadd [#allocation6], %s24
      %s27 = sshll.u32 [#allocation5], 4
      %s28 = int_to_ptr.vmem [resolvable:$true] %s27
      %30 = dma.hbm_to_vmem [thread:$0]  %s1, 32, %s28, [#allocation6]
    $region9: #{tpu_custom_call.1} parent=1 // pred_fallthru
      _
    // Predicated region
    $region10: #{tpu_custom_call.1} parent=1 // pred_check
      _
    $region11: #{tpu_custom_call.1} parent=1 // pred_check_branch
      %32 = sbr.rel (0) target = $region13
    $region12: #{tpu_custom_call.1} parent=1 // pred_region
      _
    $region13: #{tpu_custom_call.1} parent=1 // pred_fallthru
      _
    // Predicated region
    $region14: #{tpu_custom_call.1} parent=1 // pred_check
      _
    $region15: #{tpu_custom_call.1} parent=1 // pred_check_branch
      %34 = sbr.rel (0) target = $region17
    $region16: #{tpu_custom_call.1} parent=1 // pred_region
      %35 = dma.done [#allocation3], 64
    $region17: #{tpu_custom_call.1} parent=1 // pred_fallthru
      _
    // Predicated region
    $region18: #{tpu_custom_call.1} parent=1 // pred_check
      _
    $region19: #{tpu_custom_call.1} parent=1 // pred_check_branch
      %37 = sbr.rel (0) target = $region21
    $region20: #{tpu_custom_call.1} parent=1 // pred_region
      %38 = dma.done [#allocation6], 32
    $region21: #{tpu_custom_call.1} parent=1 // pred_fallthru
      _
    %v39 = vld [vmem:[#allocation2] sm:$0xf]
    %v42 = vunpack.c.l.s4 1983009808
    %v43 = vunpack.c.0.s8 %v42
    %v44 = vlaneseq
    %v45 = vshrl.u32 %v44, 7
    %v46 = vsub.s32 %v43, %v45
    %v47 = vrot.slane %v39, %v46
    %v48 = vcombine.high %v47, %v47
    %vm51 = vcmask 1041408
    %v52 = vsel %vm51, %v47, 0.0
    %v53 = vsel %vm51, %v48, 0.0
    %v54 = vadd.f32 %v52, %v53
    %55 = vadd.xlane.f32.xlu0 %v54
    %v56 = vpop.xlane.xlu0 %55
    %v57 = vrcp.pop 256.0
    %v58 = vmul.f32 %v56, %v57
    %v61 = vunpack.c.l.s4 269488144
    %v62 = vunpack.c.0.s8 %v61
    %v63 = vlaneseq
    %v64 = vshrl.u32 %v63, 7
    %v65 = vsub.s32 %v62, %v64
    %v66 = vrot.slane %v58, %v65
    %v68 = vsub.f32 %v39, %v66
    %v69 = vmul.f32 %v68, %v68
    %v72 = vunpack.c.l.s4 1983009808
    %v73 = vunpack.c.0.s8 %v72
    %v74 = vlaneseq
    %v75 = vshrl.u32 %v74, 7
    %v76 = vsub.s32 %v73, %v75
    %v77 = vrot.slane %v69, %v76
    %v78 = vcombine.high %v77, %v77
    %v81 = vsel %vm51, %v77, 0.0
    %v82 = vsel %vm51, %v78, 0.0
    %v83 = vadd.f32 %v81, %v82
    %84 = vadd.xlane.f32.xlu0 %v83
    %v85 = vpop.xlane.xlu0 %84
    %v86 = vmul.f32 %v85, %v57
    %v87 = vadd.f32 %v86, 1e-05
    %v88 = vrsqrt.pop %v87
    %v91 = vunpack.c.l.s4 269488144
    %v92 = vunpack.c.0.s8 %v91
    %v93 = vlaneseq
    %v94 = vshrl.u32 %v93, 7
    %v95 = vsub.s32 %v92, %v94
    %v96 = vrot.slane %v88, %v95
    %v98 = vmul.f32 %v68, %v96
    %v99 = vld [vmem:[#allocation5] sm:$0x3]
    %v100 = vld [vmem:[%s2] sm:$0x3]
    %v102 = vlaneseq
    %v103 = vshrl.u32 %v102, 7
    %v104 = vsub.s32 0, %v103
    %v105 = vrot.slane %v99, %v104
    %v106 = vlaneseq
    %v107 = vshrl.u32 %v106, 7
    %v108 = vsub.s32 1, %v107
    %v109 = vrot.slane %v99, %v108
    %v114 = vunpack.c.l.s4 1983009808
    %v115 = vunpack.c.0.s8 %v114
    %v116 = vlaneseq
    %v117 = vshrl.u32 %v116, 7
    %v118 = vsub.s32 %v115, %v117
    %v119 = vrot.slane %v98, %v118
    %v120 = vcombine.high %v119, %v119
    %v123 = vmul.f32 %v105, %v119
    %v124 = vmul.f32 %v109, %v120
    %v126 = vlaneseq
    %v127 = vshrl.u32 %v126, 7
    %v128 = vsub.s32 0, %v127
    %v129 = vrot.slane %v100, %v128
    %v130 = vlaneseq
    %v131 = vshrl.u32 %v130, 7
    %v132 = vsub.s32 1, %v131
    %v133 = vrot.slane %v100, %v132
    %v136 = vadd.f32 %v123, %v129
    %v137 = vadd.f32 %v124, %v133
    %v140 = vcombine.low %v136, %v137
    %v142 = vunpack.c.l.s4 1983009808
    %v143 = vunpack.c.0.s8 %v142
    %v144 = vlaneseq
    %v145 = vshrl.u32 %v144, 7
    %v146 = vsub.s32 %v143, %v145
    %v147 = vrot.slane %v140, %v146
    %149 = vst [vmem:[#allocation7] sm:$0xf] %v147
    // Predicated region
    $region22: #{tpu_custom_call.1} parent=1 // pred_check
      _
    $region23: #{tpu_custom_call.1} parent=1 // pred_check_branch
      %151 = sbr.rel (0) target = $region25
    $region24: #{tpu_custom_call.1} parent=1 // pred_region
      %s153 = ssub.s32 64, 64
      %154 = vsyncadd [#allocation4], %s153
      %s156 = sshll.u32 [#allocation7], 4
      %s157 = int_to_ptr.vmem [resolvable:$true] %s156
      %159 = dma.vmem_to_hbm [thread:$0]  %s157, 64, %s3, [#allocation4]
    $region25: #{tpu_custom_call.1} parent=1 // pred_fallthru
      _
    // Predicated region
    $region26: #{tpu_custom_call.1} parent=1 // pred_check
      _
    $region27: #{tpu_custom_call.1} parent=1 // pred_check_branch
      %161 = sbr.rel (0) target = $region29
    $region28: #{tpu_custom_call.1} parent=1 // pred_region
      %162 = dma.done [#allocation4], 64
    $region29: #{tpu_custom_call.1} parent=1 // pred_fallthru
      _
    %163 = vsyncpa [#allocation3], 1
    %164 = vsyncpa [#allocation6], 1
    %165 = vsyncpa [#allocation4], 1

</llo_original>
